<compile_context>
chip_gen: v5e
topology: v5e:2x2
jax: 0.10.0
libtpu: 0.0.40
codegen_flags: <defaults>
</compile_context>

<pallas_src>
import jax
import jax.numpy as jnp
from jax.experimental import pallas as pl
from jax.experimental.pallas import tpu as pltpu


_LANE = 128
_MAX_TILE_ROWS = 8192       # per-step row tile cap (4 MiB of f32 at C=128)


def _round_up(x, m):
    return ((x + m - 1) // m) * m


def _tpu_vmem_capacity_bytes():
    """Physical VMEM per TensorCore; defensive fallback to 64 MiB (v7x)."""
    try:
        info = pltpu.get_tpu_info()
        cap = getattr(info, "vmem_capacity_bytes", None)
        if isinstance(cap, int) and cap > 0:
            return cap
    except Exception:
        pass
    return 64 * 1024 * 1024


def _num_tensorcores():
    """TensorCores per chip (2 on v7x, 1 on v5e/v6e); defensive fallback 1."""
    try:
        info = pltpu.get_tpu_info()
        for attr in ("num_cores", "tensorcore_count", "num_tensorcores",
                     "core_count", "cores_per_chip"):
            v = getattr(info, attr, None)
            if isinstance(v, int) and v > 0:
                return v
    except Exception:
        pass
    try:
        if "v7" in jax.devices()[0].device_kind.lower():
            return 2
    except Exception:
        pass
    return 1


def _plan_tiling(n, c_pad, in_itemsize, label_row_bytes):
    """Pick (batch_tile, vmem_limit_bytes) from a per-generation VMEM budget."""
    vmem_cap = _tpu_vmem_capacity_bytes()
    scoped_cap = max(32 << 20, int(vmem_cap * 0.75))   # <=48 MiB on v7x, <=96 MiB on v5e/v6e
    budget = scoped_cap - (8 << 20)                    # headroom for Mosaic scratch

    # Conservative per-row VMEM cost of one grid step:
    #   * double-buffered y_pred tile
    #   * double-buffered lane-padded (TB, 1) label tile
    #   * ~4 full-tile f32 elementwise intermediates (yp_f32, one_hot, products)
    per_row = (2 * c_pad * in_itemsize) + (2 * label_row_bytes) + (4 * c_pad * 4)

    tile = min(_MAX_TILE_ROWS, max(32, budget // per_row), _round_up(n, 32))
    if tile >= 512:
        tile = (tile // 512) * 512
    else:
        tile = max(32, (tile // 32) * 32)

    vmem_needed = per_row * tile + 5 * 8 * c_pad * 4   # + accumulators / out block
    vmem_limit = int(min(scoped_cap, max(32 << 20, vmem_needed + (8 << 20))))
    return int(tile), vmem_limit


def _make_kernel(n_rows, batch_tile, c_pad, blocks_per_split):
    tb = batch_tile

    def _fold8(x):
        # (TB, C) -> (8, C): pure vreg adds on the VPU. The cross-sublane
        # reduce to (1, C) is deferred to the (tiny) JAX epilogue.
        return jnp.sum(x.reshape(tb // 8, 8, c_pad), axis=0)

    def kernel(y_pred_ref, y_true_ref, out_ref, tp_ref, colsum_ref, cnt_ref):
        split = pl.program_id(0)   # parallel axis (TensorCore split)
        step = pl.program_id(1)    # arbitrary (reduction) axis

        @pl.when(step == 0)
        def _init():
            tp_ref[...] = jnp.zeros_like(tp_ref)
            colsum_ref[...] = jnp.zeros_like(colsum_ref)
            cnt_ref[...] = jnp.zeros_like(cnt_ref)

        blk = split * blocks_per_split + step          # unclamped global block idx
        cls_idx = jax.lax.broadcasted_iota(jnp.int32, (tb, c_pad), 1)
        full_block = (blk + 1) * tb <= n_rows

        def _accumulate(yp, one_hot):
            tp_ref[...] += _fold8(yp * one_hot)        # sum(y_pred * one_hot)
            colsum_ref[...] += _fold8(yp)              # = tp + fp
            cnt_ref[...] += _fold8(one_hot)            # = tp + fn

        @pl.when(full_block)
        def _full():
            # Hot path: fully in-range block -> no row masking work at all.
            yp = y_pred_ref[...].astype(jnp.float32)
            labels = y_true_ref[...].astype(jnp.int32)           # (TB, 1)
            one_hot = (cls_idx == labels).astype(jnp.float32)
            _accumulate(yp, one_hot)

        @pl.when(jnp.logical_not(full_block))
        def _ragged():
            # Last / overhang block: mask out-of-range rows. Also neutralizes
            # the clamped duplicate DMA when a split overhangs the array.
            row = blk * tb + jax.lax.broadcasted_iota(jnp.int32, (tb, 1), 0)
            valid = row < n_rows                                  # (TB, 1)
            yp = jnp.where(valid, y_pred_ref[...].astype(jnp.float32), 0.0)
            labels = y_true_ref[...].astype(jnp.int32)
            one_hot = jnp.logical_and(cls_idx == labels, valid).astype(jnp.float32)
            _accumulate(yp, one_hot)

        @pl.when(step == pl.num_programs(1) - 1)
        def _finalize():
            # Full unmasked (8, C) stores; no sub-8-sublane masked vst.
            out_ref[0, 0, :, :] = tp_ref[...]
            out_ref[0, 1, :, :] = colsum_ref[...]
            out_ref[0, 2, :, :] = cnt_ref[...]

    return kernel


def soft_f1_loss(y_pred, y_true, *, batch_tile=None):
    """y_pred: (N, C) float, y_true: (N,) int class indices -> scalar loss."""
    n, c = y_pred.shape

    # Lane-dense class dim: pad C up to a multiple of 128. Padded classes give
    # tp = colsum = cnt = 0 and are excluded from the final mean.
    c_pad = max(_LANE, _round_up(c, _LANE))
    if c_pad != c:
        y_pred = jnp.pad(y_pred, ((0, 0), (0, c_pad - c)))

    in_itemsize = jnp.dtype(y_pred.dtype).itemsize
    if c_pad <= 32767:
        label_dtype, label_row_bytes = jnp.int16, 256   # packed 2 rows/sublane
    else:
        label_dtype, label_row_bytes = jnp.int32, 512
    y_true2d = y_true.reshape(n, 1).astype(label_dtype)

    if batch_tile is None:
        batch_tile, vmem_limit = _plan_tiling(n, c_pad, in_itemsize, label_row_bytes)
    else:
        if batch_tile % 32 != 0:
            raise ValueError("batch_tile must be a multiple of 32")
        per_row = 2 * c_pad * in_itemsize + 2 * label_row_bytes + 4 * c_pad * 4
        vmem_limit = int(min(max(32 << 20, int(_tpu_vmem_capacity_bytes() * 0.75)),
                             max(32 << 20, per_row * batch_tile + (8 << 20))))

    total_blocks = -(-n // batch_tile)
    nsplit = max(1, min(2, _num_tensorcores(), total_blocks))
    blocks_per_split = -(-total_blocks // nsplit)
    last_block = total_blocks - 1

    def in_map(split, step):
        # Clamp so the DMA never targets an out-of-range block; the kernel's
        # row mask (based on the unclamped index) zeroes any duplicated read.
        return (jnp.minimum(split * blocks_per_split + step, last_block), 0)

    def out_map(split, step):
        return (split, 0, 0, 0)

    kernel = _make_kernel(n, batch_tile, c_pad, blocks_per_split)

    cost = pl.CostEstimate(
        flops=5 * n * c_pad,
        transcendentals=0,
        bytes_accessed=(n * c_pad * in_itemsize
                        + n * jnp.dtype(label_dtype).itemsize
                        + nsplit * 3 * 8 * c_pad * 4),
    )

    partials = pl.pallas_call(
        kernel,
        out_shape=jax.ShapeDtypeStruct((nsplit, 3, 8, c_pad), jnp.float32),
        grid_spec=pltpu.PrefetchScalarGridSpec(
            num_scalar_prefetch=0,
            grid=(nsplit, blocks_per_split),
            in_specs=[
                pl.BlockSpec((batch_tile, c_pad), in_map),
                pl.BlockSpec((batch_tile, 1), in_map),
            ],
            out_specs=pl.BlockSpec((1, 3, 8, c_pad), out_map),
            scratch_shapes=[
                pltpu.VMEM((8, c_pad), jnp.float32),   # tp accumulator
                pltpu.VMEM((8, c_pad), jnp.float32),   # col_sum (= tp + fp)
                pltpu.VMEM((8, c_pad), jnp.float32),   # count   (= tp + fn)
            ],
        ),
        compiler_params=pltpu.CompilerParams(
            # On v7x the leading "parallel" axis should shard across the two
            # TensorCores; if a profile shows one core doing all steps, switch
            # that axis to pltpu.CORE_PARALLEL.
            dimension_semantics=("parallel", "arbitrary"),
            vmem_limit_bytes=vmem_limit,
        ),
        cost_estimate=cost,
    )(y_pred, y_true2d)

    # Tiny epilogue: combine core partials, cross-sublane reduce, form F1.
    sums = jnp.sum(partials, axis=(0, 2))      # (3, C_pad)
    tp = sums[0, :c]
    colsum = sums[1, :c]                        # = tp + fp
    cnt = sums[2, :c]                           # = tp + fn
    eps = 1e-16
    precision = tp / (colsum + eps)             # tp / (tp + fp + eps)
    recall = tp / (cnt + eps)                   # tp / (tp + fn + eps)
    f1 = 2.0 * precision * recall / (precision + recall + eps)
    f1 = jnp.nan_to_num(f1)
    return 1.0 - jnp.mean(f1)


def _soft_f1_loss_ref(y_pred, y_true):
    """Pure-JAX reference matching the PyTorch module."""
    _, c = y_pred.shape
    one_hot = jax.nn.one_hot(y_true, c, dtype=y_pred.dtype)
    tp = jnp.sum(y_pred * one_hot, axis=0)
    fp = jnp.sum((1.0 - one_hot) * y_pred, axis=0)
    fn = jnp.sum(one_hot * (1.0 - y_pred), axis=0)
    eps = 1e-16
    precision = tp / (tp + fp + eps)
    recall = tp / (tp + fn + eps)
    f1 = 2.0 * precision * recall / (precision + recall + eps)
    f1 = jnp.nan_to_num(f1)
    return 1.0 - jnp.mean(f1)


if __name__ == "__main__":
    key = jax.random.PRNGKey(0)
    k_pred, k_true = jax.random.split(key)

    # Case 1: C = 128 (lane-dense), small batch.
    num_classes, batch = 128, 16
    logits = jax.random.normal(k_pred, (batch, num_classes), dtype=jnp.float32)
    y_pred = jax.nn.softmax(logits, axis=-1)
    y_true = jax.random.randint(k_true, (batch,), 0, num_classes, dtype=jnp.int32)
    loss = jax.block_until_ready(soft_f1_loss(y_pred, y_true))
    ref = jax.block_until_ready(_soft_f1_loss_ref(y_pred, y_true))
    assert jnp.allclose(loss, ref, atol=1e-5, rtol=1e-5), (loss, ref)

    # Case 2: ragged N that is not a multiple of the tile.
    n2 = 13
    yp2 = jax.nn.softmax(jax.random.normal(k_pred, (n2, num_classes)), axis=-1)
    yt2 = jax.random.randint(k_true, (n2,), 0, num_classes, dtype=jnp.int32)
    loss2 = jax.block_until_ready(soft_f1_loss(yp2, yt2))
    ref2 = jax.block_until_ready(_soft_f1_loss_ref(yp2, yt2))
    assert jnp.allclose(loss2, ref2, atol=1e-5, rtol=1e-5), (loss2, ref2)

    # Case 3: small class count (exercises lane padding + padded-class exclusion).
    n3, c3 = 40, 10
    yp3 = jax.nn.softmax(jax.random.normal(k_pred, (n3, c3)), axis=-1)
    yt3 = jax.random.randint(k_true, (n3,), 0, c3, dtype=jnp.int32)
    loss3 = jax.block_until_ready(soft_f1_loss(yp3, yt3))
    ref3 = jax.block_until_ready(_soft_f1_loss_ref(yp3, yt3))
    assert jnp.allclose(loss3, ref3, atol=1e-5, rtol=1e-5), (loss3, ref3)

    print("KERNEL_OK")
</pallas_src>

<mosaic_0001>
module attributes {stable_mosaic.version = 11 : i64} {
  func.func @kernel(%arg0: i32, %arg1: i32, %arg2: memref<32x128xf32, #tpu.memory_space<vmem>>, %arg3: memref<32x1xi16, #tpu.memory_space<vmem>>, %arg4: memref<1x3x8x128xf32, #tpu.memory_space<vmem>>, %arg5: memref<8x128xf32, #tpu.memory_space<vmem>>, %arg6: memref<8x128xf32, #tpu.memory_space<vmem>>, %arg7: memref<8x128xf32, #tpu.memory_space<vmem>>) attributes {dimension_semantics = [#tpu.dimension_semantics<parallel>, #tpu.dimension_semantics<arbitrary>], iteration_bounds = array<i64: 1, 1>, scalar_prefetch = 0 : i64, scratch_operands = 3 : i64, tpu.core_type = #tpu.core_type<tc>, window_params = [{transform_indices = @transform_0, window_bounds = array<i64: 32, 128>}, {transform_indices = @transform_1, window_bounds = array<i64: 32, 1>}, {transform_indices = @transform_2, window_bounds = array<i64: 1, 3, 8, 128>}]} {
    %c0_i32 = arith.constant 0 : i32
    %0 = arith.cmpi eq, %arg1, %c0_i32 : i32
    %1 = arith.extui %0 : i1 to i32
    %c0_i32_0 = arith.constant 0 : i32
    %2 = arith.cmpi ne, %1, %c0_i32_0 : i32
    scf.if %2 {
      %cst = arith.constant 0.000000e+00 : f32
      %17 = vector.broadcast %cst : f32 to vector<8x128xf32>
      %c0 = arith.constant 0 : index
      %c0_6 = arith.constant 0 : index
      %18 = vector.load %arg5[%c0, %c0_6] : memref<8x128xf32, #tpu.memory_space<vmem>>, vector<8x128xf32>
      tpu.vector_store %arg5[%c0, %c0_6], %17 {strides = array<i32>} : memref<8x128xf32, #tpu.memory_space<vmem>>, vector<8x128xf32>,
      %cst_7 = arith.constant 0.000000e+00 : f32
      %19 = vector.broadcast %cst_7 : f32 to vector<8x128xf32>
      %c0_8 = arith.constant 0 : index
      %c0_9 = arith.constant 0 : index
      %20 = vector.load %arg6[%c0_8, %c0_9] : memref<8x128xf32, #tpu.memory_space<vmem>>, vector<8x128xf32>
      tpu.vector_store %arg6[%c0_8, %c0_9], %19 {strides = array<i32>} : memref<8x128xf32, #tpu.memory_space<vmem>>, vector<8x128xf32>,
      %cst_10 = arith.constant 0.000000e+00 : f32
      %21 = vector.broadcast %cst_10 : f32 to vector<8x128xf32>
      %c0_11 = arith.constant 0 : index
      %c0_12 = arith.constant 0 : index
      %22 = vector.load %arg7[%c0_11, %c0_12] : memref<8x128xf32, #tpu.memory_space<vmem>>, vector<8x128xf32>
      tpu.vector_store %arg7[%c0_11, %c0_12], %21 {strides = array<i32>} : memref<8x128xf32, #tpu.memory_space<vmem>>, vector<8x128xf32>,
    } else {
    }
    %c1_i32 = arith.constant 1 : i32
    %3 = arith.muli %arg0, %c1_i32 : i32
    %4 = arith.addi %3, %arg1 : i32
    %5 = tpu.iota {dimensions = array<i32: 1>} : vector<32x128xi32>
    %c1_i32_1 = arith.constant 1 : i32
    %6 = arith.addi %4, %c1_i32_1 : i32
    %c32_i32 = arith.constant 32 : i32
    %7 = arith.muli %6, %c32_i32 : i32
    %c16_i32 = arith.constant 16 : i32
    %8 = arith.cmpi sle, %7, %c16_i32 : i32
    %9 = arith.extui %8 : i1 to i32
    %c0_i32_2 = arith.constant 0 : i32
    %10 = arith.cmpi ne, %9, %c0_i32_2 : i32
    scf.if %10 {
      %c0 = arith.constant 0 : index
      %c0_6 = arith.constant 0 : index
      %17 = vector.load %arg2[%c0, %c0_6] : memref<32x128xf32, #tpu.memory_space<vmem>>, vector<32x128xf32>
      %c0_7 = arith.constant 0 : index
      %c0_8 = arith.constant 0 : index
      %18 = vector.load %arg3[%c0_7, %c0_8] : memref<32x1xi16, #tpu.memory_space<vmem>>, vector<32x1xi16>
      %19 = arith.extsi %18 : vector<32x1xi16> to vector<32x1xi32>
      %20 = vector.broadcast %19 : vector<32x1xi32> to vector<32x128xi32>
      %21 = arith.cmpi eq, %5, %20 : vector<32x128xi32>
      %22 = arith.extui %21 : vector<32x128xi1> to vector<32x128xi32>
      %23 = arith.sitofp %22 : vector<32x128xi32> to vector<32x128xf32>
      %c0_9 = arith.constant 0 : index
      %c0_10 = arith.constant 0 : index
      %24 = vector.load %arg5[%c0_9, %c0_10] : memref<8x128xf32, #tpu.memory_space<vmem>>, vector<8x128xf32>
      %25 = arith.mulf %17, %23 : vector<32x128xf32>
      %26 = vector.shape_cast %25 : vector<32x128xf32> to vector<4x8x128xf32>
      %cst = arith.constant dense<0.000000e+00> : vector<8x128xf32>
      %27 = vector.multi_reduction <add>, %26, %cst [0] : vector<4x8x128xf32> to vector<8x128xf32>
      %28 = arith.addf %24, %27 : vector<8x128xf32>
      %c0_11 = arith.constant 0 : index
      %c0_12 = arith.constant 0 : index
      %29 = vector.load %arg5[%c0_11, %c0_12] : memref<8x128xf32, #tpu.memory_space<vmem>>, vector<8x128xf32>
      tpu.vector_store %arg5[%c0_11, %c0_12], %28 {strides = array<i32>} : memref<8x128xf32, #tpu.memory_space<vmem>>, vector<8x128xf32>,
      %c0_13 = arith.constant 0 : index
      %c0_14 = arith.constant 0 : index
      %30 = vector.load %arg6[%c0_13, %c0_14] : memref<8x128xf32, #tpu.memory_space<vmem>>, vector<8x128xf32>
      %31 = vector.shape_cast %17 : vector<32x128xf32> to vector<4x8x128xf32>
      %cst_15 = arith.constant dense<0.000000e+00> : vector<8x128xf32>
      %32 = vector.multi_reduction <add>, %31, %cst_15 [0] : vector<4x8x128xf32> to vector<8x128xf32>
      %33 = arith.addf %30, %32 : vector<8x128xf32>
      %c0_16 = arith.constant 0 : index
      %c0_17 = arith.constant 0 : index
      %34 = vector.load %arg6[%c0_16, %c0_17] : memref<8x128xf32, #tpu.memory_space<vmem>>, vector<8x128xf32>
      tpu.vector_store %arg6[%c0_16, %c0_17], %33 {strides = array<i32>} : memref<8x128xf32, #tpu.memory_space<vmem>>, vector<8x128xf32>,
      %c0_18 = arith.constant 0 : index
      %c0_19 = arith.constant 0 : index
      %35 = vector.load %arg7[%c0_18, %c0_19] : memref<8x128xf32, #tpu.memory_space<vmem>>, vector<8x128xf32>
      %36 = vector.shape_cast %23 : vector<32x128xf32> to vector<4x8x128xf32>
      %cst_20 = arith.constant dense<0.000000e+00> : vector<8x128xf32>
      %37 = vector.multi_reduction <add>, %36, %cst_20 [0] : vector<4x8x128xf32> to vector<8x128xf32>
      %38 = arith.addf %35, %37 : vector<8x128xf32>
      %c0_21 = arith.constant 0 : index
      %c0_22 = arith.constant 0 : index
      %39 = vector.load %arg7[%c0_21, %c0_22] : memref<8x128xf32, #tpu.memory_space<vmem>>, vector<8x128xf32>
      tpu.vector_store %arg7[%c0_21, %c0_22], %38 {strides = array<i32>} : memref<8x128xf32, #tpu.memory_space<vmem>>, vector<8x128xf32>,
    } else {
    }
    %true = arith.constant true
    %11 = arith.xori %8, %true : i1
    %12 = arith.extui %11 : i1 to i32
    %c0_i32_3 = arith.constant 0 : i32
    %13 = arith.cmpi ne, %12, %c0_i32_3 : i32
    scf.if %13 {
      %c32_i32_6 = arith.constant 32 : i32
      %17 = arith.muli %4, %c32_i32_6 : i32
      %18 = tpu.iota {dimensions = array<i32: 0>} : vector<32x1xi32>
      %19 = vector.broadcast %17 : i32 to vector<32x1xi32>
      %20 = arith.addi %19, %18 : vector<32x1xi32>
      %c16_i32_7 = arith.constant 16 : i32
      %21 = vector.broadcast %c16_i32_7 : i32 to vector<32x1xi32>
      %22 = arith.cmpi slt, %20, %21 : vector<32x1xi32>
      %c0 = arith.constant 0 : index
      %c0_8 = arith.constant 0 : index
      %23 = vector.load %arg2[%c0, %c0_8] : memref<32x128xf32, #tpu.memory_space<vmem>>, vector<32x128xf32>
      %cst = arith.constant 0.000000e+00 : f32
      %24 = vector.shape_cast %22 : vector<32x1xi1> to vector<32x1xi1>
      %25 = vector.broadcast %24 : vector<32x1xi1> to vector<32x128xi1>
      %26 = vector.broadcast %cst : f32 to vector<32x128xf32>
      %27 = arith.select %25, %23, %26 : vector<32x128xi1>, vector<32x128xf32>
      %c0_9 = arith.constant 0 : index
      %c0_10 = arith.constant 0 : index
      %28 = vector.load %arg3[%c0_9, %c0_10] : memref<32x1xi16, #tpu.memory_space<vmem>>, vector<32x1xi16>
      %29 = arith.extsi %28 : vector<32x1xi16> to vector<32x1xi32>
      %30 = vector.broadcast %29 : vector<32x1xi32> to vector<32x128xi32>
      %31 = arith.cmpi eq, %5, %30 : vector<32x128xi32>
      %32 = vector.broadcast %22 : vector<32x1xi1> to vector<32x128xi1>
      %33 = arith.andi %31, %32 : vector<32x128xi1>
      %34 = arith.extui %33 : vector<32x128xi1> to vector<32x128xi32>
      %35 = arith.sitofp %34 : vector<32x128xi32> to vector<32x128xf32>
      %c0_11 = arith.constant 0 : index
      %c0_12 = arith.constant 0 : index
      %36 = vector.load %arg5[%c0_11, %c0_12] : memref<8x128xf32, #tpu.memory_space<vmem>>, vector<8x128xf32>
      %37 = arith.mulf %27, %35 : vector<32x128xf32>
      %38 = vector.shape_cast %37 : vector<32x128xf32> to vector<4x8x128xf32>
      %cst_13 = arith.constant dense<0.000000e+00> : vector<8x128xf32>
      %39 = vector.multi_reduction <add>, %38, %cst_13 [0] : vector<4x8x128xf32> to vector<8x128xf32>
      %40 = arith.addf %36, %39 : vector<8x128xf32>
      %c0_14 = arith.constant 0 : index
      %c0_15 = arith.constant 0 : index
      %41 = vector.load %arg5[%c0_14, %c0_15] : memref<8x128xf32, #tpu.memory_space<vmem>>, vector<8x128xf32>
      tpu.vector_store %arg5[%c0_14, %c0_15], %40 {strides = array<i32>} : memref<8x128xf32, #tpu.memory_space<vmem>>, vector<8x128xf32>,
      %c0_16 = arith.constant 0 : index
      %c0_17 = arith.constant 0 : index
      %42 = vector.load %arg6[%c0_16, %c0_17] : memref<8x128xf32, #tpu.memory_space<vmem>>, vector<8x128xf32>
      %43 = vector.shape_cast %27 : vector<32x128xf32> to vector<4x8x128xf32>
      %cst_18 = arith.constant dense<0.000000e+00> : vector<8x128xf32>
      %44 = vector.multi_reduction <add>, %43, %cst_18 [0] : vector<4x8x128xf32> to vector<8x128xf32>
      %45 = arith.addf %42, %44 : vector<8x128xf32>
      %c0_19 = arith.constant 0 : index
      %c0_20 = arith.constant 0 : index
      %46 = vector.load %arg6[%c0_19, %c0_20] : memref<8x128xf32, #tpu.memory_space<vmem>>, vector<8x128xf32>
      tpu.vector_store %arg6[%c0_19, %c0_20], %45 {strides = array<i32>} : memref<8x128xf32, #tpu.memory_space<vmem>>, vector<8x128xf32>,
      %c0_21 = arith.constant 0 : index
      %c0_22 = arith.constant 0 : index
      %47 = vector.load %arg7[%c0_21, %c0_22] : memref<8x128xf32, #tpu.memory_space<vmem>>, vector<8x128xf32>
      %48 = vector.shape_cast %35 : vector<32x128xf32> to vector<4x8x128xf32>
      %cst_23 = arith.constant dense<0.000000e+00> : vector<8x128xf32>
      %49 = vector.multi_reduction <add>, %48, %cst_23 [0] : vector<4x8x128xf32> to vector<8x128xf32>
      %50 = arith.addf %47, %49 : vector<8x128xf32>
      %c0_24 = arith.constant 0 : index
      %c0_25 = arith.constant 0 : index
      %51 = vector.load %arg7[%c0_24, %c0_25] : memref<8x128xf32, #tpu.memory_space<vmem>>, vector<8x128xf32>
      tpu.vector_store %arg7[%c0_24, %c0_25], %50 {strides = array<i32>} : memref<8x128xf32, #tpu.memory_space<vmem>>, vector<8x128xf32>,
    } else {
    }
    %c0_i32_4 = arith.constant 0 : i32
    %14 = arith.cmpi eq, %arg1, %c0_i32_4 : i32
    %15 = arith.extui %14 : i1 to i32
    %c0_i32_5 = arith.constant 0 : i32
    %16 = arith.cmpi ne, %15, %c0_i32_5 : i32
    scf.if %16 {
      %c0 = arith.constant 0 : index
      %c0_6 = arith.constant 0 : index
      %17 = vector.load %arg5[%c0, %c0_6] : memref<8x128xf32, #tpu.memory_space<vmem>>, vector<8x128xf32>
      %c0_7 = arith.constant 0 : index
      %c0_8 = arith.constant 0 : index
      %c0_9 = arith.constant 0 : index
      %c0_10 = arith.constant 0 : index
      %18 = vector.load %arg4[%c0_7, %c0_8, %c0_9, %c0_10] : memref<1x3x8x128xf32, #tpu.memory_space<vmem>>, vector<1x1x8x128xf32>
      %19 = vector.shape_cast %18 : vector<1x1x8x128xf32> to vector<8x128xf32>
      %20 = vector.shape_cast %17 : vector<8x128xf32> to vector<1x1x8x128xf32>
      tpu.vector_store %arg4[%c0_7, %c0_8, %c0_9, %c0_10], %20 {strides = array<i32>} : memref<1x3x8x128xf32, #tpu.memory_space<vmem>>, vector<1x1x8x128xf32>,
      %c0_11 = arith.constant 0 : index
      %c0_12 = arith.constant 0 : index
      %21 = vector.load %arg6[%c0_11, %c0_12] : memref<8x128xf32, #tpu.memory_space<vmem>>, vector<8x128xf32>
      %c0_13 = arith.constant 0 : index
      %c1 = arith.constant 1 : index
      %c0_14 = arith.constant 0 : index
      %c0_15 = arith.constant 0 : index
      %22 = vector.load %arg4[%c0_13, %c1, %c0_14, %c0_15] : memref<1x3x8x128xf32, #tpu.memory_space<vmem>>, vector<1x1x8x128xf32>
      %23 = vector.shape_cast %22 : vector<1x1x8x128xf32> to vector<8x128xf32>
      %24 = vector.shape_cast %21 : vector<8x128xf32> to vector<1x1x8x128xf32>
      tpu.vector_store %arg4[%c0_13, %c1, %c0_14, %c0_15], %24 {strides = array<i32>} : memref<1x3x8x128xf32, #tpu.memory_space<vmem>>, vector<1x1x8x128xf32>,
      %c0_16 = arith.constant 0 : index
      %c0_17 = arith.constant 0 : index
      %25 = vector.load %arg7[%c0_16, %c0_17] : memref<8x128xf32, #tpu.memory_space<vmem>>, vector<8x128xf32>
      %c0_18 = arith.constant 0 : index
      %c2 = arith.constant 2 : index
      %c0_19 = arith.constant 0 : index
      %c0_20 = arith.constant 0 : index
      %26 = vector.load %arg4[%c0_18, %c2, %c0_19, %c0_20] : memref<1x3x8x128xf32, #tpu.memory_space<vmem>>, vector<1x1x8x128xf32>
      %27 = vector.shape_cast %26 : vector<1x1x8x128xf32> to vector<8x128xf32>
      %28 = vector.shape_cast %25 : vector<8x128xf32> to vector<1x1x8x128xf32>
      tpu.vector_store %arg4[%c0_18, %c2, %c0_19, %c0_20], %28 {strides = array<i32>} : memref<1x3x8x128xf32, #tpu.memory_space<vmem>>, vector<1x1x8x128xf32>,
    } else {
    }
    return
  }
  func.func @transform_0(%arg0: i32, %arg1: i32) -> (i32, i32) {
    %c1_i32 = arith.constant 1 : i32
    %0 = arith.muli %arg0, %c1_i32 : i32
    %1 = arith.addi %0, %arg1 : i32
    %c0_i32 = arith.constant 0 : i32
    %2 = arith.minsi %1, %c0_i32 : i32
    %c0_i32_0 = arith.constant 0 : i32
    %c0_i32_1 = arith.constant 0 : i32
    return %2, %c0_i32_0 : i32, i32
  }
  func.func @transform_1(%arg0: i32, %arg1: i32) -> (i32, i32) {
    %c1_i32 = arith.constant 1 : i32
    %0 = arith.muli %arg0, %c1_i32 : i32
    %1 = arith.addi %0, %arg1 : i32
    %c0_i32 = arith.constant 0 : i32
    %2 = arith.minsi %1, %c0_i32 : i32
    %c0_i32_0 = arith.constant 0 : i32
    %c0_i32_1 = arith.constant 0 : i32
    return %2, %c0_i32_0 : i32, i32
  }
  func.func @transform_2(%arg0: i32, %arg1: i32) -> (i32, i32, i32, i32) {
    %c0_i32 = arith.constant 0 : i32
    %c0_i32_0 = arith.constant 0 : i32
    %c0_i32_1 = arith.constant 0 : i32
    %c0_i32_2 = arith.constant 0 : i32
    return %arg0, %c0_i32, %c0_i32_0, %c0_i32_1 : i32, i32, i32, i32
  }
}

</mosaic_0001>

<llo_original>
// kernel: tpu_custom_call.1
$region0: #{tpu_custom_call.1}
  #allocation0 [shape = 'u32[]', space=smem, size = 0x4, offset = 0x4, fixed_abs, tag = 'smem constant byte address 0x4 - core index']
  #allocation1 [shape = 'u32[72,128]{1,0:T(1,128)}', space=vmem, size = 0x9000, scoped, tag = 'internal scratch']
  #allocation2 [shape = 'f32[8,128]{1,0:T(8,128)}', space=vmem, size = 0x1000, scoped, tag = 'scratch operand']
  #allocation3 [shape = 'f32[8,128]{1,0:T(8,128)}', space=vmem, size = 0x1000, scoped, tag = 'scratch operand']
  #allocation4 [shape = 'f32[8,128]{1,0:T(8,128)}', space=vmem, size = 0x1000, scoped, tag = 'scratch operand']
  %s0 = inlined_call_operand.hbm [shape: f32[16,128], index: 0, kind: input, shape index: {}]
  %s1 = inlined_call_operand.vmem [shape: s16[16,1], index: 1, kind: input, shape index: {}]
  %s2 = inlined_call_operand.hbm [shape: f32[1,3,8,128], index: 2, kind: output, shape index: {}]
  %s3 = sld [smem:[#allocation0]]
  $region38: #{tpu_custom_call.1} parent=0
    _
  %s5 = ssub.s32 1, %s3
  %s6 = scalar_select 0, %s5, %s3
  $region1: #{tpu_custom_call.1} parent=0
    #allocation5 [shape = 'u8[16384]{0}', space=vmem, size = 0x4000, scoped, tag = 'input window, operand 0, single buffered']
    #allocation6 [shape = 's32[1]{0}', space=sflag, size = 0x4, scoped, tag = 'scoped memory for tpu_custom_call.1']
    #allocation7 [shape = 's32[1]{0}', space=sflag, size = 0x4, scoped, tag = 'scoped memory for tpu_custom_call.1']
    #allocation8 [shape = 'u8[12288]{0}', space=vmem, size = 0x3000, scoped, tag = 'output window, operand 0, single buffered']
    %7 = vsyncpa [#allocation6], 0
    %8 = vsyncpa [#allocation7], 0
    // Predicated region
    $region2: #{tpu_custom_call.1} parent=1 // pred_check
      _
    $region3: #{tpu_custom_call.1} parent=1 // pred_check_branch
      %10 = sbr.rel (0) target = $region5
    $region4: #{tpu_custom_call.1} parent=1 // pred_region
      %s11 = sadd.s32 0, 0
      %p12 = scmp.lt.s32.totalorder %s11, 0
      %s13 = scalar_select %p12, %s11, 0
      %s14 = smul.u32 4, %s13
      %s15 = ssub.s32 2, %s14
      %s16 = smul.u32 8, %s15
      %s17 = ssub.s32 32, %s16
      %s18 = sshll.u32 %s17, 4
      %19 = vsyncadd [#allocation6], %s18
      %p20 = scmp.ne.s32.totalorder 0, %s16
      %s21 = smul.addr %s14, 8
      %s22 = scalar_lea.hbm %s0, %s21
      %s23 = smul.u32 8, %s15
      %s24 = sshll.u32 %s22, 4
      %s25 = int_to_ptr.hbm [resolvable:$true] %s24
      %s26 = sshll.u32 [#allocation5], 4
      %s27 = int_to_ptr.vmem [resolvable:$true] %s26
      %s28 = sshll.u32 %s23, 4
      %32 = dma.hbm_to_vmem [thread:$0]  (%p20), %s25, %s28, %s27, [#allocation6], 128, 128, 8
    $region5: #{tpu_custom_call.1} parent=1 // pred_fallthru
      _
    // Predicated region
    $region6: #{tpu_custom_call.1} parent=1 // pred_check
      _
    $region7: #{tpu_custom_call.1} parent=1 // pred_check_branch
      %34 = sbr.rel (0) target = $region9
    $region8: #{tpu_custom_call.1} parent=1 // pred_region
      %s35 = sadd.s32 0, 0
      %p36 = scmp.lt.s32.totalorder %s35, 0
      %s37 = scalar_select %p36, %s35, 0
      %s38 = smul.u32 4, %s37
      %s39 = ssub.s32 2, %s38
      %s40 = smul.u32 4, %s39
      %p41 = scmp.lt.s32.totalorder %s38, 1
      %s42 = scalar_select %p41, %s38, 1
      %s43 = smul.addr %s42, 4
      %s44 = scalar_lea.vmem %s1, %s43
      %s45 = sadd.s32 0, 0
      %p46 = scmp.lt.s32.totalorder %s45, 0
      %s47 = scalar_select %p46, %s45, 0
      %s48 = smul.u32 4, %s47
      %s49 = ssub.s32 2, %s48
      %s50 = smul.u32 4, %s49
    $region9: #{tpu_custom_call.1} parent=1 // pred_fallthru
      _
    // Predicated region
    $region10: #{tpu_custom_call.1} parent=1 // pred_check
      _
    $region11: #{tpu_custom_call.1} parent=1 // pred_check_branch
      %52 = sbr.rel (0) target = $region13
    $region12: #{tpu_custom_call.1} parent=1 // pred_region
      %54 = dma.done [#allocation6], 512
    $region13: #{tpu_custom_call.1} parent=1 // pred_fallthru
      _
    %s55 = sadd.s32 0, 0
    %p56 = scmp.lt.s32.totalorder %s55, 0
    %s57 = scalar_select %p56, %s55, 0
    %s58 = smul.u32 4, %s57
    %s59 = ssub.s32 2, %s58
    %s60 = smul.u32 4, %s59
    %p61 = scmp.lt.s32.totalorder %s58, 1
    %s62 = scalar_select %p61, %s58, 1
    %s63 = smul.addr %s62, 4
    %s64 = scalar_lea.vmem %s1, %s63
    %s65 = sadd.s32 0, 0
    %p66 = scmp.lt.s32.totalorder %s65, 0
    %s67 = scalar_select %p66, %s65, 0
    %s68 = smul.u32 4, %s67
    %s69 = ssub.s32 2, %s68
    %s70 = smul.u32 8, %s69
    %s71 = sadd.s32 0, 0
    %p72 = scmp.lt.s32.totalorder %s71, 0
    %s73 = scalar_select %p72, %s71, 0
    %s74 = smul.u32 4, %s73
    %s75 = ssub.s32 2, %s74
    %s76 = smul.u32 4, %s75
    %p77 = scmp.lt.s32.totalorder %s74, 1
    %s78 = scalar_select %p77, %s74, 1
    %s79 = smul.addr %s78, 4
    %s80 = scalar_lea.vmem %s1, %s79
    %s81 = sadd.s32 0, 0
    %p82 = scmp.lt.s32.totalorder %s81, 0
    %s83 = scalar_select %p82, %s81, 0
    %s84 = smul.u32 4, %s83
    %s85 = ssub.s32 2, %s84
    %s86 = smul.u32 4, %s85
    %p87 = scmp.eq.s32.totalorder 0, 0
    // Predicated region
    $region14: #{tpu_custom_call.1} parent=1 // pred_check
      %p88 = pneg %p87
    $region15: #{tpu_custom_call.1} parent=1 // pred_check_branch
      %90 = sbr.rel (%p88) target = $region17
    $region16: #{tpu_custom_call.1} parent=1 // pred_region
      %91 = vst [vmem:[#allocation2] sm:$0xff] 0.0
      %92 = vst [vmem:[#allocation3] sm:$0xff] 0.0
      %93 = vst [vmem:[#allocation4] sm:$0xff] 0.0
    $region17: #{tpu_custom_call.1} parent=1 // pred_fallthru
      _
    %s94 = sadd.s32 0, 0
    %v95 = vlaneseq
    %v96 = vand.u32 %v95, 127
    %s97 = sadd.s32 %s94, 1
    %s98 = smul.u32 %s97, 32
    %p99 = scmp.le.s32.totalorder %s98, 16
    // Predicated region
    $region18: #{tpu_custom_call.1} parent=1 // pred_check
      %p100 = pneg %p99
    $region19: #{tpu_custom_call.1} parent=1 // pred_check_branch
      %102 = sbr.rel (%p100) target = $region21
    $region20: #{tpu_custom_call.1} parent=1 // pred_region
      %v103 = vld [vmem:[#allocation5] sm:$0xff]
      %v104 = vld [vmem:[#allocation5 + $0x8] sm:$0xff]
      %v105 = vld [vmem:[#allocation5 + $0x10] sm:$0xff]
      %v106 = vld [vmem:[#allocation5 + $0x18] sm:$0xff]
      %v107 = vld [vmem:[%s80] sm:$0xf]
      %v108 = vld [vmem:[%s80 + $0x4] sm:$0xf]
      %v109 = vld [vmem:[%s80 + $0x8] sm:$0xf]
      %v110 = vld [vmem:[%s80 + $0xc] sm:$0xf]
      %v111 = vunpack.c.l.b16 %v107
      %v112 = vunpack.c.l.b16 %v108
      %v113 = vunpack.c.l.b16 %v109
      %v114 = vunpack.c.l.b16 %v110
      %115 = vset.pattern.permute.xlu0 0
      %116 = vperm.xlu0 %115, %v111
      %v117 = vpop.permute.xlu0 %116
      %118 = vset.pattern.permute.xlu0 0
      %119 = vperm.xlu0 %118, %v112
      %v120 = vpop.permute.xlu0 %119
      %121 = vset.pattern.permute.xlu0 0
      %122 = vperm.xlu0 %121, %v113
      %v123 = vpop.permute.xlu0 %122
      %124 = vset.pattern.permute.xlu0 0
      %125 = vperm.xlu0 %124, %v114
      %v126 = vpop.permute.xlu0 %125
      %vm127 = vcmp.eq.s32.totalorder %v96, %v117
      %vm128 = vcmp.eq.s32.totalorder %v96, %v120
      %vm129 = vcmp.eq.s32.totalorder %v96, %v123
      %vm130 = vcmp.eq.s32.totalorder %v96, %v126
      %v131 = vsel %vm127, 1, 0
      %v132 = vsel %vm128, 1, 0
      %v133 = vsel %vm129, 1, 0
      %v134 = vsel %vm130, 1, 0
      %v135 = vcvt.s32.f32 %v131
      %v136 = vcvt.s32.f32 %v132
      %v137 = vcvt.s32.f32 %v133
      %v138 = vcvt.s32.f32 %v134
      %v139 = vld [vmem:[#allocation2] sm:$0xff]
      %v140 = vmul.f32 %v103, %v135
      %v141 = vmul.f32 %v104, %v136
      %v142 = vmul.f32 %v105, %v137
      %v143 = vmul.f32 %v106, %v138
      %v144 = vadd.f32 %v140, %v141
      %v145 = vadd.f32 %v144, %v142
      %v146 = vadd.f32 %v145, %v143
      %v147 = vadd.f32 %v139, %v146
      %148 = vst [vmem:[#allocation2] sm:$0xff] %v147
      %v149 = vld [vmem:[#allocation3] sm:$0xff]
      %v150 = vadd.f32 %v103, %v104
      %v151 = vadd.f32 %v150, %v105
      %v152 = vadd.f32 %v151, %v106
      %v153 = vadd.f32 %v149, %v152
      %154 = vst [vmem:[#allocation3] sm:$0xff] %v153
      %v155 = vld [vmem:[#allocation4] sm:$0xff]
      %v156 = vadd.f32 %v135, %v136
      %v157 = vadd.f32 %v156, %v137
      %v158 = vadd.f32 %v157, %v138
      %v159 = vadd.f32 %v155, %v158
      %160 = vst [vmem:[#allocation4] sm:$0xff] %v159
    $region21: #{tpu_custom_call.1} parent=1 // pred_fallthru
      _
    %p161 = scmp.gt.s32.totalorder %s98, 16
    // Predicated region
    $region22: #{tpu_custom_call.1} parent=1 // pred_check
      %p162 = pneg %p161
    $region23: #{tpu_custom_call.1} parent=1 // pred_check_branch
      %164 = sbr.rel (%p162) target = $region25
    $region24: #{tpu_custom_call.1} parent=1 // pred_region
      %s165 = smul.u32 %s94, 32
      %v166 = vlaneseq
      %v167 = vshrl.u32 %v166, 7
      %v168 = vadd.s32 %v167, 8
      %v169 = vadd.s32 %v167, 16
      %v170 = vadd.s32 %v167, 24
      %v171 = vstv %s165
      %v172 = vadd.s32 %v171, %v167
      %v173 = vadd.s32 %v171, %v168
      %v174 = vadd.s32 %v171, %v169
      %v175 = vadd.s32 %v171, %v170
      %vm176 = vcmp.lt.s32.totalorder %v172, 16
      %vm177 = vcmp.lt.s32.totalorder %v173, 16
      %vm178 = vcmp.lt.s32.totalorder %v174, 16
      %vm179 = vcmp.lt.s32.totalorder %v175, 16
      %v180 = vld [vmem:[#allocation5] sm:$0xff]
      %v181 = vld [vmem:[#allocation5 + $0x8] sm:$0xff]
      %v182 = vld [vmem:[#allocation5 + $0x10] sm:$0xff]
      %v183 = vld [vmem:[#allocation5 + $0x18] sm:$0xff]
      %v184 = vsel %vm176, 1, 0
      %v185 = vsel %vm177, 1, 0
      %v186 = vsel %vm178, 1, 0
      %v187 = vsel %vm179, 1, 0
      %vm188 = vcmp.eq.s32.totalorder %v184, 1
      %vm189 = vcmp.eq.s32.totalorder %v185, 1
      %vm190 = vcmp.eq.s32.totalorder %v186, 1
      %vm191 = vcmp.eq.s32.totalorder %v187, 1
      %v192 = vsel %vm188, %v180, 0.0
      %v193 = vsel %vm189, %v181, 0.0
      %v194 = vsel %vm190, %v182, 0.0
      %v195 = vsel %vm191, %v183, 0.0
      %v196 = vld [vmem:[%s80] sm:$0xf]
      %v197 = vld [vmem:[%s80 + $0x4] sm:$0xf]
      %v198 = vld [vmem:[%s80 + $0x8] sm:$0xf]
      %v199 = vld [vmem:[%s80 + $0xc] sm:$0xf]
      %v200 = vunpack.c.l.b16 %v196
      %v201 = vunpack.c.l.b16 %v197
      %v202 = vunpack.c.l.b16 %v198
      %v203 = vunpack.c.l.b16 %v199
      %204 = vset.pattern.permute.xlu0 0
      %205 = vperm.xlu0 %204, %v200
      %v206 = vpop.permute.xlu0 %205
      %207 = vset.pattern.permute.xlu0 0
      %208 = vperm.xlu0 %207, %v201
      %v209 = vpop.permute.xlu0 %208
      %210 = vset.pattern.permute.xlu0 0
      %211 = vperm.xlu0 %210, %v202
      %v212 = vpop.permute.xlu0 %211
      %213 = vset.pattern.permute.xlu0 0
      %214 = vperm.xlu0 %213, %v203
      %v215 = vpop.permute.xlu0 %214
      %vm216 = vcmp.eq.s32.totalorder %v96, %v206
      %vm217 = vcmp.eq.s32.totalorder %v96, %v209
      %vm218 = vcmp.eq.s32.totalorder %v96, %v212
      %vm219 = vcmp.eq.s32.totalorder %v96, %v215
      %vm220 = vmand %vm216, %vm188
      %vm221 = vmand %vm217, %vm189
      %vm222 = vmand %vm218, %vm190
      %vm223 = vmand %vm219, %vm191
      %v224 = vsel %vm220, 1, 0
      %v225 = vsel %vm221, 1, 0
      %v226 = vsel %vm222, 1, 0
      %v227 = vsel %vm223, 1, 0
      %v228 = vcvt.s32.f32 %v224
      %v229 = vcvt.s32.f32 %v225
      %v230 = vcvt.s32.f32 %v226
      %v231 = vcvt.s32.f32 %v227
      %v232 = vld [vmem:[#allocation2] sm:$0xff]
      %v233 = vmul.f32 %v192, %v228
      %v234 = vmul.f32 %v193, %v229
      %v235 = vmul.f32 %v194, %v230
      %v236 = vmul.f32 %v195, %v231
      %v237 = vadd.f32 %v233, %v234
      %v238 = vadd.f32 %v237, %v235
      %v239 = vadd.f32 %v238, %v236
      %v240 = vadd.f32 %v232, %v239
      %241 = vst [vmem:[#allocation2] sm:$0xff] %v240
      %v242 = vld [vmem:[#allocation3] sm:$0xff]
      %v243 = vadd.f32 %v192, %v193
      %v244 = vadd.f32 %v243, %v194
      %v245 = vadd.f32 %v244, %v195
      %v246 = vadd.f32 %v242, %v245
      %247 = vst [vmem:[#allocation3] sm:$0xff] %v246
      %v248 = vld [vmem:[#allocation4] sm:$0xff]
      %v249 = vadd.f32 %v228, %v229
      %v250 = vadd.f32 %v249, %v230
      %v251 = vadd.f32 %v250, %v231
      %v252 = vadd.f32 %v248, %v251
      %253 = vst [vmem:[#allocation4] sm:$0xff] %v252
    $region25: #{tpu_custom_call.1} parent=1 // pred_fallthru
      _
    // Predicated region
    $region26: #{tpu_custom_call.1} parent=1 // pred_check
      %p254 = pneg %p87
    $region27: #{tpu_custom_call.1} parent=1 // pred_check_branch
      %256 = sbr.rel (%p254) target = $region29
    $region28: #{tpu_custom_call.1} parent=1 // pred_region
      %v257 = vld [vmem:[#allocation2] sm:$0xff]
      %258 = vst [vmem:[#allocation8] sm:$0xff] %v257
      %v259 = vld [vmem:[#allocation3] sm:$0xff]
      %s260 = scalar_lea.vmem [#allocation8], 8
      %261 = vst [vmem:[%s260] sm:$0xff] %v259
      %v262 = vld [vmem:[#allocation4] sm:$0xff]
      %s263 = scalar_lea.vmem [#allocation8], 16
      %264 = vst [vmem:[%s263] sm:$0xff] %v262
    $region29: #{tpu_custom_call.1} parent=1 // pred_fallthru
      _
    // Predicated region
    $region30: #{tpu_custom_call.1} parent=1 // pred_check
      _
    $region31: #{tpu_custom_call.1} parent=1 // pred_check_branch
      %266 = sbr.rel (0) target = $region33
    $region32: #{tpu_custom_call.1} parent=1 // pred_region
      %268 = vsyncadd [#allocation7], 0
      %s269 = sshll.u32 [#allocation8], 4
      %s270 = int_to_ptr.vmem [resolvable:$true] %s269
      %s271 = sshll.u32 %s2, 4
      %s272 = int_to_ptr.hbm [resolvable:$true] %s271
      %277 = dma.vmem_to_hbm [thread:$0]  %s270, 384, %s272, [#allocation7], 128, 128, 8
    $region33: #{tpu_custom_call.1} parent=1 // pred_fallthru
      _
    // Predicated region
    $region34: #{tpu_custom_call.1} parent=1 // pred_check
      _
    $region35: #{tpu_custom_call.1} parent=1 // pred_check_branch
      %279 = sbr.rel (0) target = $region37
    $region36: #{tpu_custom_call.1} parent=1 // pred_region
      %281 = dma.done [#allocation7], 384
    $region37: #{tpu_custom_call.1} parent=1 // pred_fallthru
      _
    %282 = vsyncpa [#allocation6], 1
    %283 = vsyncpa [#allocation7], 1

</llo_original>
